<compile_context>
chip_gen: v7x
topology: tpu7x:2x2x1
jax: 0.10.0
libtpu: 0.0.40
codegen_flags: <defaults>
</compile_context>

<pallas_src>
import functools

import jax
import jax.numpy as jnp
from jax.experimental import pallas as pl
from jax.experimental.pallas import tpu as pltpu


def _round_up(v, m):
    return (v + m - 1) // m * m


def _ffn_kernel(x_ref, w13_ref, w2t_ref, o_ref, acc_ref, *, tile_h):
    """One (token-tile, hidden-tile) grid step.

    x_ref  : (tile_n, Dp)        bf16 token tile
    w13_ref: (Dp, 2*tile_h)      fused [w1t_k | w3t_k] tile, bf16
    w2t_ref: (tile_h, Dp)        w2t tile, bf16
    o_ref  : (tile_n, Dp)        output tile (resident across hidden axis)
    acc_ref: (tile_n, Dp) f32    VMEM accumulator over hidden tiles
    """
    k = pl.program_id(1)

    @pl.when(k == 0)
    def _():
        acc_ref[...] = jnp.zeros_like(acc_ref)

    x = x_ref[...]
    # Fused gate/up projection: one MXU stream, then static lane-aligned split.
    h = jnp.dot(x, w13_ref[...], preferred_element_type=jnp.float32)
    h1 = h[:, :tile_h]
    h3 = h[:, tile_h:]
    # SiLU(h1) * h3 in f32 (sigmoid on EUP, muls on VPU).
    gated = (h1 * jax.nn.sigmoid(h1)) * h3
    # Down projection for this hidden tile; accumulate in f32.
    acc_ref[...] += jnp.dot(gated.astype(w2t_ref.dtype), w2t_ref[...],
                            preferred_element_type=jnp.float32)

    @pl.when(k == pl.num_programs(1) - 1)
    def _():
        o_ref[...] = acc_ref[...].astype(o_ref.dtype)


def prepare_ffn_params(w1, w2, w3, *, tile_h=256, compute_dtype=jnp.bfloat16):
    """One-time parameter prep (do at init, NOT per forward call).

    w1, w3: (hidden, dim); w2: (dim, hidden)  — PyTorch nn.Linear layout.
    Pads dim/hidden to multiples of 128 (lane-dense), transposes to matmul
    layout, fuses w1/w3 tile-interleaved along hidden, casts to MXU dtype.
    """
    hidden, dim = w1.shape
    dp = _round_up(dim, 128)
    th = min(tile_h, _round_up(hidden, 128))
    hp = _round_up(hidden, th)
    n_h = hp // th

    w1t = jnp.zeros((dp, hp), compute_dtype).at[:dim, :hidden].set(
        w1.T.astype(compute_dtype))
    w3t = jnp.zeros((dp, hp), compute_dtype).at[:dim, :hidden].set(
        w3.T.astype(compute_dtype))
    # Interleave per hidden tile so block k (width 2*th) is [w1t_k | w3t_k].
    w13 = jnp.stack(
        [w1t.reshape(dp, n_h, th), w3t.reshape(dp, n_h, th)], axis=2
    ).reshape(dp, 2 * hp)
    w2t = jnp.zeros((hp, dp), compute_dtype).at[:hidden, :dim].set(
        w2.T.astype(compute_dtype))
    return {"w13": w13, "w2t": w2t, "dim": dim, "hidden": hidden,
            "dp": dp, "hp": hp, "tile_h": th}


def feed_forward(x, params, *, tile_n=256):
    """x: (B, T, dim) -> (B, T, dim).  Inference path (dropout = identity)."""
    B, T, dim = x.shape
    assert dim == params["dim"]
    dp, hp, th = params["dp"], params["hp"], params["tile_h"]
    w13, w2t = params["w13"], params["w2t"]
    compute_dtype = w13.dtype

    N = B * T
    tn = min(tile_n, _round_up(N, 8))
    np_ = _round_up(N, tn)

    # Zero-pad tokens/features to lane-dense tiles (padding contributes zeros).
    x2d = jnp.zeros((np_, dp), compute_dtype).at[:N, :dim].set(
        x.reshape(N, dim).astype(compute_dtype))

    grid = (np_ // tn, hp // th)
    itemsize = jnp.dtype(compute_dtype).itemsize
    cost = pl.CostEstimate(
        flops=int(6 * np_ * dp * hp),
        transcendentals=int(np_ * hp),
        bytes_accessed=int((np_ * dp + dp * 2 * hp + hp * dp) * itemsize
                           + np_ * dp * jnp.dtype(x.dtype).itemsize),
    )

    out = pl.pallas_call(
        functools.partial(_ffn_kernel, tile_h=th),
        out_shape=jax.ShapeDtypeStruct((np_, dp), x.dtype),
        grid_spec=pltpu.PrefetchScalarGridSpec(
            num_scalar_prefetch=0,
            grid=grid,
            in_specs=[
                pl.BlockSpec((tn, dp), lambda i, k: (i, 0)),       # x tile
                pl.BlockSpec((dp, 2 * th), lambda i, k: (0, k)),   # fused w1|w3
                pl.BlockSpec((th, dp), lambda i, k: (k, 0)),       # w2 tile
            ],
            out_specs=pl.BlockSpec((tn, dp), lambda i, k: (i, 0)),
            scratch_shapes=[pltpu.VMEM((tn, dp), jnp.float32)],
        ),
        compiler_params=pltpu.CompilerParams(
            dimension_semantics=("parallel", "arbitrary"),
            vmem_limit_bytes=48 * 1024 * 1024,
        ),
        cost_estimate=cost,
    )(x2d, w13, w2t)

    return out[:N, :dim].reshape(B, T, dim)


def _ref_feed_forward(x, w1, w2, w3):
    h1 = jnp.einsum("btd,hd->bth", x, w1)
    h3 = jnp.einsum("btd,hd->bth", x, w3)
    g = jax.nn.silu(h1) * h3
    return jnp.einsum("bth,dh->btd", g, w2)


def _llama_hidden(dim, multiple_of):
    hidden = 4 * dim
    hidden = int(2 * hidden / 3)
    return multiple_of * ((hidden + multiple_of - 1) // multiple_of)


def _make_weights(key, dim, hidden):
    k1, k2, k3 = jax.random.split(key, 3)
    # nn.Linear-style deterministic init: U(-1/sqrt(fan_in), 1/sqrt(fan_in))
    w1 = jax.random.uniform(k1, (hidden, dim), jnp.float32,
                            -1.0 / dim ** 0.5, 1.0 / dim ** 0.5)
    w3 = jax.random.uniform(k3, (hidden, dim), jnp.float32,
                            -1.0 / dim ** 0.5, 1.0 / dim ** 0.5)
    w2 = jax.random.uniform(k2, (dim, hidden), jnp.float32,
                            -1.0 / hidden ** 0.5, 1.0 / hidden ** 0.5)
    return w1, w2, w3


if __name__ == "__main__":
    key = jax.random.PRNGKey(0)

    # Config 1: module's default hidden sizing (dim=32, multiple_of=32 ->
    #   hidden=96); exercises lane/sublane padding (32->128, 96->128).
    # Config 2: dim=256, multiple_of=128 -> hidden=768, N=160; exercises a real
    #   multi-step grid (3 token tiles x 3 hidden tiles) and the accumulator.
    configs = [
        dict(dim=32, multiple_of=32, B=2, T=8, tile_n=256, tile_h=256),
        dict(dim=256, multiple_of=128, B=2, T=80, tile_n=64, tile_h=256),
    ]

    for cfg in configs:
        dim = cfg["dim"]
        hidden = _llama_hidden(dim, cfg["multiple_of"])
        kx, kw, key = jax.random.split(key, 3)
        x = jax.random.normal(kx, (cfg["B"], cfg["T"], dim), dtype=jnp.float32)
        w1, w2, w3 = _make_weights(kw, dim, hidden)

        params = prepare_ffn_params(w1, w2, w3, tile_h=cfg["tile_h"])
        out = jax.block_until_ready(
            feed_forward(x, params, tile_n=cfg["tile_n"]))

        ref = _ref_feed_forward(x, w1, w2, w3)
        assert out.shape == ref.shape
        # bf16 MXU operands with f32 accumulation vs f32 reference.
        assert jnp.allclose(out, ref, atol=2e-2, rtol=2e-2), (
            f"mismatch vs reference (dim={dim}, hidden={hidden})")

    print("KERNEL_OK")
</pallas_src>

<mosaic_0001>
module attributes {stable_mosaic.version = 11 : i64} {
  func.func @_ffn_kernel(%arg0: i32, %arg1: i32, %arg2: memref<16x128xbf16, #tpu.memory_space<vmem>>, %arg3: memref<128x256xbf16, #tpu.memory_space<vmem>>, %arg4: memref<128x128xbf16, #tpu.memory_space<vmem>>, %arg5: memref<16x128xf32, #tpu.memory_space<vmem>>, %arg6: memref<16x128xf32, #tpu.memory_space<vmem>>) attributes {dimension_semantics = [#tpu.dimension_semantics<parallel>, #tpu.dimension_semantics<arbitrary>], iteration_bounds = array<i64: 1, 1>, scalar_prefetch = 0 : i64, scratch_operands = 1 : i64, tpu.core_type = #tpu.core_type<tc>, window_params = [{transform_indices = @transform_0, window_bounds = array<i64: 16, 128>}, {transform_indices = @transform_1, window_bounds = array<i64: 128, 256>}, {transform_indices = @transform_2, window_bounds = array<i64: 128, 128>}, {transform_indices = @transform_3, window_bounds = array<i64: 16, 128>}]} {
    %c0_i32 = arith.constant 0 : i32
    %0 = arith.cmpi eq, %arg1, %c0_i32 : i32
    %1 = arith.extui %0 : i1 to i32
    %c0_i32_0 = arith.constant 0 : i32
    %2 = arith.cmpi ne, %1, %c0_i32_0 : i32
    scf.if %2 {
      %cst_14 = arith.constant 0.000000e+00 : f32
      %24 = vector.broadcast %cst_14 : f32 to vector<16x128xf32>
      %c0_15 = arith.constant 0 : index
      %c0_16 = arith.constant 0 : index
      %25 = vector.load %arg6[%c0_15, %c0_16] : memref<16x128xf32, #tpu.memory_space<vmem>>, vector<16x128xf32>
      tpu.vector_store %arg6[%c0_15, %c0_16], %24 {strides = array<i32>} : memref<16x128xf32, #tpu.memory_space<vmem>>, vector<16x128xf32>,
    } else {
    }
    %c0 = arith.constant 0 : index
    %c0_1 = arith.constant 0 : index
    %3 = vector.load %arg2[%c0, %c0_1] : memref<16x128xbf16, #tpu.memory_space<vmem>>, vector<16x128xbf16>
    %c0_2 = arith.constant 0 : index
    %c0_3 = arith.constant 0 : index
    %4 = vector.load %arg3[%c0_2, %c0_3] : memref<128x256xbf16, #tpu.memory_space<vmem>>, vector<128x256xbf16>
    %cst = arith.constant dense<0.000000e+00> : vector<16x256xf32>
    %5 = tpu.matmul %3, %4, %cst {dimension_numbers = #tpu.dot_dimension_numbers<[1], [0], [0], [1], [0, 0, 1, 1], [], []>} : vector<16x128xbf16>, vector<128x256xbf16>, vector<16x256xf32> -> vector<16x256xf32>
    %6 = vector.extract_strided_slice %5 {offsets = [0, 0], sizes = [16, 128], strides = [1, 1]} : vector<16x256xf32> to vector<16x128xf32>
    %7 = vector.extract_strided_slice %5 {offsets = [0, 128], sizes = [16, 128], strides = [1, 1]} : vector<16x256xf32> to vector<16x128xf32>
    %8 = arith.negf %6 : vector<16x128xf32>
    %9 = math.exp %8 : vector<16x128xf32>
    %cst_4 = arith.constant 1.000000e+00 : f32
    %10 = vector.broadcast %cst_4 : f32 to vector<16x128xf32>
    %11 = arith.addf %10, %9 : vector<16x128xf32>
    %12 = arith.divf %10, %11 : vector<16x128xf32>
    %13 = arith.mulf %6, %12 : vector<16x128xf32>
    %14 = arith.mulf %13, %7 : vector<16x128xf32>
    %c0_5 = arith.constant 0 : index
    %c0_6 = arith.constant 0 : index
    %15 = vector.load %arg6[%c0_5, %c0_6] : memref<16x128xf32, #tpu.memory_space<vmem>>, vector<16x128xf32>
    %16 = arith.truncf %14 : vector<16x128xf32> to vector<16x128xbf16>
    %c0_7 = arith.constant 0 : index
    %c0_8 = arith.constant 0 : index
    %17 = vector.load %arg4[%c0_7, %c0_8] : memref<128x128xbf16, #tpu.memory_space<vmem>>, vector<128x128xbf16>
    %cst_9 = arith.constant dense<0.000000e+00> : vector<16x128xf32>
    %18 = tpu.matmul %16, %17, %cst_9 {dimension_numbers = #tpu.dot_dimension_numbers<[1], [0], [0], [1], [0, 0, 1, 1], [], []>} : vector<16x128xbf16>, vector<128x128xbf16>, vector<16x128xf32> -> vector<16x128xf32>
    %19 = arith.addf %15, %18 : vector<16x128xf32>
    %c0_10 = arith.constant 0 : index
    %c0_11 = arith.constant 0 : index
    %20 = vector.load %arg6[%c0_10, %c0_11] : memref<16x128xf32, #tpu.memory_space<vmem>>, vector<16x128xf32>
    tpu.vector_store %arg6[%c0_10, %c0_11], %19 {strides = array<i32>} : memref<16x128xf32, #tpu.memory_space<vmem>>, vector<16x128xf32>,
    %c0_i32_12 = arith.constant 0 : i32
    %21 = arith.cmpi eq, %arg1, %c0_i32_12 : i32
    %22 = arith.extui %21 : i1 to i32
    %c0_i32_13 = arith.constant 0 : i32
    %23 = arith.cmpi ne, %22, %c0_i32_13 : i32
    scf.if %23 {
      %c0_14 = arith.constant 0 : index
      %c0_15 = arith.constant 0 : index
      %24 = vector.load %arg6[%c0_14, %c0_15] : memref<16x128xf32, #tpu.memory_space<vmem>>, vector<16x128xf32>
      %c0_16 = arith.constant 0 : index
      %c0_17 = arith.constant 0 : index
      %25 = vector.load %arg5[%c0_16, %c0_17] : memref<16x128xf32, #tpu.memory_space<vmem>>, vector<16x128xf32>
      tpu.vector_store %arg5[%c0_16, %c0_17], %24 {strides = array<i32>} : memref<16x128xf32, #tpu.memory_space<vmem>>, vector<16x128xf32>,
    } else {
    }
    return
  }
  func.func @transform_0(%arg0: i32, %arg1: i32) -> (i32, i32) {
    %c0_i32 = arith.constant 0 : i32
    %c0_i32_0 = arith.constant 0 : i32
    return %arg0, %c0_i32 : i32, i32
  }
  func.func @transform_1(%arg0: i32, %arg1: i32) -> (i32, i32) {
    %c0_i32 = arith.constant 0 : i32
    %c0_i32_0 = arith.constant 0 : i32
    return %c0_i32, %arg1 : i32, i32
  }
  func.func @transform_2(%arg0: i32, %arg1: i32) -> (i32, i32) {
    %c0_i32 = arith.constant 0 : i32
    %c0_i32_0 = arith.constant 0 : i32
    return %arg1, %c0_i32 : i32, i32
  }
  func.func @transform_3(%arg0: i32, %arg1: i32) -> (i32, i32) {
    %c0_i32 = arith.constant 0 : i32
    %c0_i32_0 = arith.constant 0 : i32
    return %arg0, %c0_i32 : i32, i32
  }
}

</mosaic_0001>

<llo_original>
// kernel: tpu_custom_call.1
$region0: #{tpu_custom_call.1}
  #allocation0 [shape = 'u32[]', space=smem, size = 0x4, offset = 0x4, fixed_abs, tag = 'smem constant byte address 0x4 - core index']
  #allocation1 [shape = 'u32[144,128]{1,0:T(1,128)}', space=vmem, size = 0x12000, scoped, tag = 'internal scratch']
  #allocation2 [shape = 'f32[16,128]{1,0:T(8,128)}', space=vmem, size = 0x2000, scoped, tag = 'scratch operand']
  %s0 = inlined_call_operand.hbm [shape: bf16[16,128], index: 0, kind: input, shape index: {}]
  %s1 = inlined_call_operand.hbm [shape: bf16[128,256], index: 1, kind: input, shape index: {}]
  %s2 = inlined_call_operand.hbm [shape: bf16[128,128], index: 2, kind: input, shape index: {}]
  %s3 = inlined_call_operand.hbm [shape: f32[16,128], index: 3, kind: output, shape index: {}]
  %s4 = sld [smem:[#allocation0]]
  $region42: #{tpu_custom_call.1} parent=0
    _
  %s6 = ssub.s32 1, %s4
  %s7 = scalar_select 0, %s6, %s4
  $region1: #{tpu_custom_call.1} parent=0
    #allocation3 [shape = 'u8[4096]{0}', space=vmem, size = 0x1000, scoped, tag = 'input window, operand 0, single buffered']
    #allocation4 [shape = 's32[1]{0}', space=sflag, size = 0x4, scoped, tag = 'scoped memory for tpu_custom_call.1']
    #allocation5 [shape = 's32[1]{0}', space=sflag, size = 0x4, scoped, tag = 'scoped memory for tpu_custom_call.1']
    #allocation6 [shape = 'u8[65536]{0}', space=vmem, size = 0x10000, scoped, tag = 'input window, operand 1, single buffered']
    #allocation7 [shape = 's32[1]{0}', space=sflag, size = 0x4, scoped, tag = 'scoped memory for tpu_custom_call.1']
    #allocation8 [shape = 'u8[32768]{0}', space=vmem, size = 0x8000, scoped, tag = 'input window, operand 2, single buffered']
    #allocation9 [shape = 'u8[8192]{0}', space=vmem, size = 0x2000, scoped, tag = 'output window, operand 0, single buffered']
    %8 = vsyncpa [#allocation4], 0
    %9 = vsyncpa [#allocation7], 0
    %10 = vsyncpa [#allocation5], 0
    // Predicated region
    $region2: #{tpu_custom_call.1} parent=1 // pred_check
      _
    $region3: #{tpu_custom_call.1} parent=1 // pred_check_branch
      %12 = sbr.rel (0) target = $region5
    $region4: #{tpu_custom_call.1} parent=1 // pred_region
      %s14 = ssub.s32 128, 128
      %15 = vsyncadd [#allocation4], %s14
      %s16 = sshll.u32 [#allocation3], 4
      %s17 = int_to_ptr.vmem [resolvable:$true] %s16
      %22 = dma.hbm_to_vmem [thread:$0]  %s0, 128, %s17, [#allocation4], 64, 64, 4
    $region5: #{tpu_custom_call.1} parent=1 // pred_fallthru
      _
    // Predicated region
    $region6: #{tpu_custom_call.1} parent=1 // pred_check
      _
    $region7: #{tpu_custom_call.1} parent=1 // pred_check_branch
      %24 = sbr.rel (0) target = $region9
    $region8: #{tpu_custom_call.1} parent=1 // pred_region
      %s26 = ssub.s32 2048, 2048
      %27 = vsyncadd [#allocation7], %s26
      %s28 = sshll.u32 [#allocation6], 4
      %s29 = int_to_ptr.vmem [resolvable:$true] %s28
      %34 = dma.hbm_to_vmem [thread:$0]  %s1, 2048, %s29, [#allocation7], 128, 128, 8
    $region9: #{tpu_custom_call.1} parent=1 // pred_fallthru
      _
    // Predicated region
    $region10: #{tpu_custom_call.1} parent=1 // pred_check
      _
    $region11: #{tpu_custom_call.1} parent=1 // pred_check_branch
      %36 = sbr.rel (0) target = $region13
    $region12: #{tpu_custom_call.1} parent=1 // pred_region
      %s38 = ssub.s32 1024, 1024
      %39 = vsyncadd [#allocation7], %s38
      %s40 = sshll.u32 [#allocation8], 4
      %s41 = int_to_ptr.vmem [resolvable:$true] %s40
      %46 = dma.hbm_to_vmem [thread:$0]  %s2, 1024, %s41, [#allocation7], 64, 64, 4
    $region13: #{tpu_custom_call.1} parent=1 // pred_fallthru
      _
    // Predicated region
    $region14: #{tpu_custom_call.1} parent=1 // pred_check
      _
    $region15: #{tpu_custom_call.1} parent=1 // pred_check_branch
      %48 = sbr.rel (0) target = $region17
    $region16: #{tpu_custom_call.1} parent=1 // pred_region
      %49 = dma.done [#allocation4], 128
    $region17: #{tpu_custom_call.1} parent=1 // pred_fallthru
      _
    // Predicated region
    $region18: #{tpu_custom_call.1} parent=1 // pred_check
      _
    $region19: #{tpu_custom_call.1} parent=1 // pred_check_branch
      %51 = sbr.rel (0) target = $region21
    $region20: #{tpu_custom_call.1} parent=1 // pred_region
      %52 = dma.done [#allocation7], 2048
    $region21: #{tpu_custom_call.1} parent=1 // pred_fallthru
      _
    // Predicated region
    $region22: #{tpu_custom_call.1} parent=1 // pred_check
      _
    $region23: #{tpu_custom_call.1} parent=1 // pred_check_branch
      %54 = sbr.rel (0) target = $region25
    $region24: #{tpu_custom_call.1} parent=1 // pred_region
      %55 = dma.done [#allocation7], 1024
    $region25: #{tpu_custom_call.1} parent=1 // pred_fallthru
      _
    %p57 = scmp.eq.s32.totalorder 0, 0
    // Predicated region
    $region26: #{tpu_custom_call.1} parent=1 // pred_check
      %p58 = pneg %p57
    $region27: #{tpu_custom_call.1} parent=1 // pred_check_branch
      %60 = sbr.rel (%p58) target = $region29
    $region28: #{tpu_custom_call.1} parent=1 // pred_region
      %61 = vst [vmem:[#allocation2] sm:$0xff] 0.0
      %62 = vst [vmem:[#allocation2 + $0x8] sm:$0xff] 0.0
    $region29: #{tpu_custom_call.1} parent=1 // pred_fallthru
      _
    %v63 = vld [vmem:[#allocation3] sm:$0xf]
    %v64 = vld [vmem:[#allocation3 + $0x4] sm:$0xf]
    %v65 = vld [vmem:[#allocation6] sm:$0xff]
    %v66 = vld [vmem:[#allocation6 + $0x8] sm:$0xff]
    %v67 = vld [vmem:[#allocation6 + $0x10] sm:$0xff]
    %v68 = vld [vmem:[#allocation6 + $0x18] sm:$0xff]
    %v69 = vld [vmem:[#allocation6 + $0x20] sm:$0xff]
    %v70 = vld [vmem:[#allocation6 + $0x28] sm:$0xff]
    %v71 = vld [vmem:[#allocation6 + $0x30] sm:$0xff]
    %v72 = vld [vmem:[#allocation6 + $0x38] sm:$0xff]
    %v73 = vld [vmem:[#allocation6 + $0x40] sm:$0xff]
    %v74 = vld [vmem:[#allocation6 + $0x48] sm:$0xff]
    %v75 = vld [vmem:[#allocation6 + $0x50] sm:$0xff]
    %v76 = vld [vmem:[#allocation6 + $0x58] sm:$0xff]
    %v77 = vld [vmem:[#allocation6 + $0x60] sm:$0xff]
    %v78 = vld [vmem:[#allocation6 + $0x68] sm:$0xff]
    %v79 = vld [vmem:[#allocation6 + $0x70] sm:$0xff]
    %v80 = vld [vmem:[#allocation6 + $0x78] sm:$0xff]
    %v83 = vunpack.c.l.b16 %v63
    %v84 = vunpack.c.l.b16 %v64
    %v85 = vpack.c.b16 %v84, %v83
    %v103 = vunpack.c.l.b16 %v65
    %v104 = vunpack.c.h.b16 %v65
    %v105 = vunpack.c.l.b16 %v66
    %v106 = vunpack.c.h.b16 %v66
    %v107 = vunpack.c.l.b16 %v67
    %v108 = vunpack.c.h.b16 %v67
    %v109 = vunpack.c.l.b16 %v68
    %v110 = vunpack.c.h.b16 %v68
    %v111 = vunpack.c.l.b16 %v69
    %v112 = vunpack.c.h.b16 %v69
    %v113 = vunpack.c.l.b16 %v70
    %v114 = vunpack.c.h.b16 %v70
    %v115 = vunpack.c.l.b16 %v71
    %v116 = vunpack.c.h.b16 %v71
    %v117 = vunpack.c.l.b16 %v72
    %v118 = vunpack.c.h.b16 %v72
    %v119 = vunpack.c.l.b16 %v73
    %v120 = vunpack.c.h.b16 %v73
    %v121 = vunpack.c.l.b16 %v74
    %v122 = vunpack.c.h.b16 %v74
    %v123 = vunpack.c.l.b16 %v75
    %v124 = vunpack.c.h.b16 %v75
    %v125 = vunpack.c.l.b16 %v76
    %v126 = vunpack.c.h.b16 %v76
    %v127 = vunpack.c.l.b16 %v77
    %v128 = vunpack.c.h.b16 %v77
    %v129 = vunpack.c.l.b16 %v78
    %v130 = vunpack.c.h.b16 %v78
    %v131 = vunpack.c.l.b16 %v79
    %v132 = vunpack.c.h.b16 %v79
    %v133 = vunpack.c.l.b16 %v80
    %v134 = vunpack.c.h.b16 %v80
    %v135 = vpack.c.b16 %v105, %v103
    %v136 = vpack.c.b16 %v106, %v104
    %v137 = vpack.c.b16 %v109, %v107
    %v138 = vpack.c.b16 %v110, %v108
    %v139 = vpack.c.b16 %v113, %v111
    %v140 = vpack.c.b16 %v114, %v112
    %v141 = vpack.c.b16 %v117, %v115
    %v142 = vpack.c.b16 %v118, %v116
    %v143 = vpack.c.b16 %v121, %v119
    %v144 = vpack.c.b16 %v122, %v120
    %v145 = vpack.c.b16 %v125, %v123
    %v146 = vpack.c.b16 %v126, %v124
    %v147 = vpack.c.b16 %v129, %v127
    %v148 = vpack.c.b16 %v130, %v128
    %v149 = vpack.c.b16 %v133, %v131
    %v150 = vpack.c.b16 %v134, %v132
    %167 = vmatprep.subr.bf16.mxu0 %v136
    %168 = vmatpush1.bf16.msra.mxu0 %v135
    %169 = vmatprep.subr.bf16.mxu0 %v138
    %170 = vmatpush1.bf16.msra.mxu0 %v137
    %171 = vmatprep.subr.bf16.mxu0 %v140
    %172 = vmatpush1.bf16.msra.mxu0 %v139
    %173 = vmatprep.subr.bf16.mxu0 %v142
    %174 = vmatpush1.bf16.msra.mxu0 %v141
    %175 = vmatprep.subr.bf16.mxu0 %v144
    %176 = vmatpush1.bf16.msra.mxu0 %v143
    %177 = vmatprep.subr.bf16.mxu0 %v146
    %178 = vmatpush1.bf16.msra.mxu0 %v145
    %179 = vmatprep.subr.bf16.mxu0 %v148
    %180 = vmatpush1.bf16.msra.mxu0 %v147
    %181 = vmatprep.subr.bf16.mxu0 %v150
    %182 = vmatpush1.bf16.msra.mxu0 %v149
    %183 = vmatprep.subr.bf16.mxu0 0
    %184 = vmatpush1.bf16.msra.mxu0 0
    %185 = vmatprep.subr.bf16.mxu0 0
    %186 = vmatpush1.bf16.msra.mxu0 0
    %187 = vmatprep.subr.bf16.mxu0 0
    %188 = vmatpush1.bf16.msra.mxu0 0
    %189 = vmatprep.subr.bf16.mxu0 0
    %190 = vmatpush1.bf16.msra.mxu0 0
    %191 = vmatprep.subr.bf16.mxu0 0
    %192 = vmatpush1.bf16.msra.mxu0 0
    %193 = vmatprep.subr.bf16.mxu0 0
    %194 = vmatpush1.bf16.msra.mxu0 0
    %195 = vmatprep.subr.bf16.mxu0 0
    %196 = vmatpush1.bf16.msra.mxu0 0
    %197 = vmatprep.subr.bf16.mxu0 0
    %198 = vmatpush1.bf16.msra.mxu0 0
    %199 = vmatprep.mubr.bf16.mxu0 0
    %200 = vmatmul.mubr.bf16.gmra.mrb[0].mxu0 %v85
    %v201 = vpop.f32.mrb[0].mxu0
    %v202 = vadd.f32 0.0, %v201
    %v203 = vpop.f32.mrb[0].mxu0
    %v204 = vadd.f32 0.0, %v203
    %v205 = vpop.f32.mrb[0].mxu0
    %v206 = vadd.f32 0.0, %v205
    %v207 = vpop.f32.mrb[0].mxu0
    %v208 = vadd.f32 0.0, %v207
    %209 = vdwg.mxu0
    %v210 = vxor.u32 %v202, 2147483648
    %v211 = vxor.u32 %v206, 2147483648
    %v212 = vmul.f32 %v210, 1.442695
    %v213 = vpow.pop %v212
    %v214 = vmul.f32 %v211, 1.442695
    %v215 = vpow.pop %v214
    %v216 = vadd.f32 %v213, 1.0
    %v217 = vadd.f32 %v215, 1.0
    %v218 = vrcp.pop %v216
    %v219 = vmul.f32 1.0, %v218
    %v220 = vrcp.pop %v217
    %v221 = vmul.f32 1.0, %v220
    %v222 = vmul.f32 %v202, %v219
    %v223 = vmul.f32 %v206, %v221
    %v224 = vmul.f32 %v222, %v204
    %v225 = vmul.f32 %v223, %v208
    %v226 = vld [vmem:[#allocation2] sm:$0xff]
    %v227 = vld [vmem:[#allocation2 + $0x8] sm:$0xff]
    %v228 = vpack.c.bf16 %v225, %v224
    %v229 = vld [vmem:[#allocation8] sm:$0xf]
    %v230 = vld [vmem:[#allocation8 + $0x4] sm:$0xf]
    %v231 = vld [vmem:[#allocation8 + $0x8] sm:$0xf]
    %v232 = vld [vmem:[#allocation8 + $0xc] sm:$0xf]
    %v233 = vld [vmem:[#allocation8 + $0x10] sm:$0xf]
    %v234 = vld [vmem:[#allocation8 + $0x14] sm:$0xf]
    %v235 = vld [vmem:[#allocation8 + $0x18] sm:$0xf]
    %v236 = vld [vmem:[#allocation8 + $0x1c] sm:$0xf]
    %v237 = vld [vmem:[#allocation8 + $0x20] sm:$0xf]
    %v238 = vld [vmem:[#allocation8 + $0x24] sm:$0xf]
    %v239 = vld [vmem:[#allocation8 + $0x28] sm:$0xf]
    %v240 = vld [vmem:[#allocation8 + $0x2c] sm:$0xf]
    %v241 = vld [vmem:[#allocation8 + $0x30] sm:$0xf]
    %v242 = vld [vmem:[#allocation8 + $0x34] sm:$0xf]
    %v243 = vld [vmem:[#allocation8 + $0x38] sm:$0xf]
    %v244 = vld [vmem:[#allocation8 + $0x3c] sm:$0xf]
    %v261 = vunpack.c.l.b16 %v229
    %v262 = vunpack.c.l.b16 %v230
    %v263 = vunpack.c.l.b16 %v231
    %v264 = vunpack.c.l.b16 %v232
    %v265 = vunpack.c.l.b16 %v233
    %v266 = vunpack.c.l.b16 %v234
    %v267 = vunpack.c.l.b16 %v235
    %v268 = vunpack.c.l.b16 %v236
    %v269 = vunpack.c.l.b16 %v237
    %v270 = vunpack.c.l.b16 %v238
    %v271 = vunpack.c.l.b16 %v239
    %v272 = vunpack.c.l.b16 %v240
    %v273 = vunpack.c.l.b16 %v241
    %v274 = vunpack.c.l.b16 %v242
    %v275 = vunpack.c.l.b16 %v243
    %v276 = vunpack.c.l.b16 %v244
    %v277 = vpack.c.b16 %v262, %v261
    %v278 = vpack.c.b16 %v264, %v263
    %v279 = vpack.c.b16 %v266, %v265
    %v280 = vpack.c.b16 %v268, %v267
    %v281 = vpack.c.b16 %v270, %v269
    %v282 = vpack.c.b16 %v272, %v271
    %v283 = vpack.c.b16 %v274, %v273
    %v284 = vpack.c.b16 %v276, %v275
    %293 = vmatprep.subr.bf16.mxu0 0
    %294 = vmatpush1.bf16.msra.mxu0 %v277
    %295 = vmatprep.subr.bf16.mxu0 0
    %296 = vmatpush1.bf16.msra.mxu0 %v278
    %297 = vmatprep.subr.bf16.mxu0 0
    %298 = vmatpush1.bf16.msra.mxu0 %v279
    %299 = vmatprep.subr.bf16.mxu0 0
    %300 = vmatpush1.bf16.msra.mxu0 %v280
    %301 = vmatprep.subr.bf16.mxu0 0
    %302 = vmatpush1.bf16.msra.mxu0 %v281
    %303 = vmatprep.subr.bf16.mxu0 0
    %304 = vmatpush1.bf16.msra.mxu0 %v282
    %305 = vmatprep.subr.bf16.mxu0 0
    %306 = vmatpush1.bf16.msra.mxu0 %v283
    %307 = vmatprep.subr.bf16.mxu0 0
    %308 = vmatpush1.bf16.msra.mxu0 %v284
    %309 = vmatprep.subr.bf16.mxu0 0
    %310 = vmatpush1.bf16.msra.mxu0 0
    %311 = vmatprep.subr.bf16.mxu0 0
    %312 = vmatpush1.bf16.msra.mxu0 0
    %313 = vmatprep.subr.bf16.mxu0 0
    %314 = vmatpush1.bf16.msra.mxu0 0
    %315 = vmatprep.subr.bf16.mxu0 0
    %316 = vmatpush1.bf16.msra.mxu0 0
    %317 = vmatprep.subr.bf16.mxu0 0
    %318 = vmatpush1.bf16.msra.mxu0 0
    %319 = vmatprep.subr.bf16.mxu0 0
    %320 = vmatpush1.bf16.msra.mxu0 0
    %321 = vmatprep.subr.bf16.mxu0 0
    %322 = vmatpush1.bf16.msra.mxu0 0
    %323 = vmatprep.subr.bf16.mxu0 0
    %324 = vmatpush1.bf16.msra.mxu0 0
    %325 = vmatprep.mubr.bf16.mxu0 0
    %326 = vmatmul.mubr.bf16.gmra.mrb[0].mxu0 %v228
    %v327 = vpop.f32.mrb[0].mxu0
    %v328 = vadd.f32 0.0, %v327
    %v329 = vpop.f32.mrb[0].mxu0
    %v330 = vpop.f32.mrb[0].mxu0
    %v331 = vadd.f32 0.0, %v330
    %v332 = vpop.f32.mrb[0].mxu0
    %333 = vdwg.mxu0
    %v334 = vadd.f32 %v226, %v328
    %v335 = vadd.f32 %v227, %v331
    %336 = vst [vmem:[#allocation2] sm:$0xff] %v334
    %337 = vst [vmem:[#allocation2 + $0x8] sm:$0xff] %v335
    // Predicated region
    $region30: #{tpu_custom_call.1} parent=1 // pred_check
      %p338 = pneg %p57
    $region31: #{tpu_custom_call.1} parent=1 // pred_check_branch
      %340 = sbr.rel (%p338) target = $region33
    $region32: #{tpu_custom_call.1} parent=1 // pred_region
      %v341 = vld [vmem:[#allocation2] sm:$0xff]
      %v342 = vld [vmem:[#allocation2 + $0x8] sm:$0xff]
      %343 = vst [vmem:[#allocation9] sm:$0xff] %v341
      %344 = vst [vmem:[#allocation9 + $0x8] sm:$0xff] %v342
    $region33: #{tpu_custom_call.1} parent=1 // pred_fallthru
      _
    // Predicated region
    $region34: #{tpu_custom_call.1} parent=1 // pred_check
      _
    $region35: #{tpu_custom_call.1} parent=1 // pred_check_branch
      %346 = sbr.rel (0) target = $region37
    $region36: #{tpu_custom_call.1} parent=1 // pred_region
      %s348 = ssub.s32 256, 256
      %349 = vsyncadd [#allocation5], %s348
      %s350 = sshll.u32 [#allocation9], 4
      %s351 = int_to_ptr.vmem [resolvable:$true] %s350
      %356 = dma.vmem_to_hbm [thread:$0]  %s351, 256, %s3, [#allocation5], 128, 128, 8
    $region37: #{tpu_custom_call.1} parent=1 // pred_fallthru
      _
    // Predicated region
    $region38: #{tpu_custom_call.1} parent=1 // pred_check
      _
    $region39: #{tpu_custom_call.1} parent=1 // pred_check_branch
      %358 = sbr.rel (0) target = $region41
    $region40: #{tpu_custom_call.1} parent=1 // pred_region
      %359 = dma.done [#allocation5], 256
    $region41: #{tpu_custom_call.1} parent=1 // pred_fallthru
      _
    %360 = vsyncpa [#allocation4], 1
    %361 = vsyncpa [#allocation7], 1
    %362 = vsyncpa [#allocation5], 1

</llo_original>
